<compile_context>
chip_gen: v7x
topology: tpu7x:2x2x1
jax: 0.10.0
libtpu: 0.0.40
codegen_flags: <defaults>
</compile_context>

<pallas_src>
import numpy as np
import jax
import jax.numpy as jnp
from jax.experimental import pallas as pl
from jax.experimental.pallas import tpu as pltpu


def _min_fill(dtype):
    """Neutral element for a min-accumulation in `dtype` (only used to mask the
    ragged tail tile)."""
    dtype = jnp.dtype(dtype)
    if jnp.issubdtype(dtype, jnp.floating):
        try:
            has_inf = bool(np.isinf(np.asarray(np.inf, dtype=dtype)))
        except (OverflowError, ValueError):
            has_inf = False
        return np.inf if has_inf else float(jnp.finfo(dtype).max)
    if dtype == jnp.bool_:
        return True
    return int(jnp.iinfo(dtype).max)


def _make_kernel(N, tn, n_steps, needs_mask, fill):
    if n_steps == 1:
        # Whole reduction fits in one block (possibly several fused batch rows).
        def kernel(seq_ref, out_ref):
            out_ref[...] = jnp.min(seq_ref[...], axis=1, keepdims=True)

        return kernel

    def tile_min(seq_ref, n, masked):
        t = seq_ref[...]  # (1, tn, tD), native dtype -- no f32 upcast
        if masked:
            # Per-row validity mask; jnp.where broadcasts it across lanes.
            row = jax.lax.broadcasted_iota(jnp.int32, (1, tn, 1), 1)
            valid = (n * tn + row) < N
            t = jnp.where(valid, t, jnp.array(fill, t.dtype))
        return jnp.min(t, axis=1, keepdims=True)

    def kernel(seq_ref, out_ref):
        n = pl.program_id(2)
        n_last = pl.num_programs(2) - 1

        @pl.when(n == 0)
        def _():
            # First step: direct write -- no fill-init of the accumulator.
            out_ref[...] = tile_min(seq_ref, n, masked=False)

        if needs_mask:
            @pl.when(jnp.logical_and(n > 0, n < n_last))
            def _():
                out_ref[...] = jnp.minimum(
                    out_ref[...], tile_min(seq_ref, n, masked=False)
                )

            @pl.when(jnp.logical_and(n > 0, n == n_last))
            def _():
                out_ref[...] = jnp.minimum(
                    out_ref[...], tile_min(seq_ref, n, masked=True)
                )
        else:
            @pl.when(n > 0)
            def _():
                out_ref[...] = jnp.minimum(
                    out_ref[...], tile_min(seq_ref, n, masked=False)
                )

    return kernel


def min_readout(seq, *, tile_bytes=8 << 20, small_fallback_bytes=1 << 20):
    """Pallas equivalent of MinReadout.forward: min over axis 1 of (B, N, D)."""
    B, N, D = seq.shape
    dtype = seq.dtype
    itemsize = jnp.dtype(dtype).itemsize
    total_bytes = B * N * D * itemsize

    # Tiny inputs: pallas_call launch/pipeline overhead exceeds the work; let
    # XLA's fused reduce handle it.
    if small_fallback_bytes and total_bytes <= small_fallback_bytes:
        return jnp.min(seq, axis=1)

    # Lane-aligned feature split so both v7x TensorCores get parallel work even
    # when the batch axis alone cannot be parallelized.
    d_split = 2 if (B < 2 and D % 256 == 0) else 1
    tD = D // d_split

    # Sublane packing: 8 rows for 32-bit, 16 for 16-bit, 32 for 8-bit dtypes.
    pack = max(8, 32 // itemsize)

    # Largest node tile fitting the per-buffer VMEM budget (double-buffered by
    # the BlockSpec pipeline), rounded down to the sublane pack.
    max_rows = max(pack, (tile_bytes // max(1, tD * itemsize)) // pack * pack)

    if N <= max_rows:
        # Whole reduction in a single step; fuse batch rows to keep DMAs large.
        tn = N
        n_steps = 1
        bt = int(max(1, min(B, tile_bytes // max(1, N * tD * itemsize))))
    else:
        tn = int(max_rows)
        n_steps = int(pl.cdiv(N, tn))
        bt = 1

    needs_mask = (n_steps > 1) and (N % tn != 0)
    fill = _min_fill(dtype)

    grid = (pl.cdiv(B, bt), d_split, n_steps)

    out3 = pl.pallas_call(
        _make_kernel(N, tn, n_steps, needs_mask, fill),
        out_shape=jax.ShapeDtypeStruct((B, 1, D), dtype),
        grid_spec=pltpu.PrefetchScalarGridSpec(
            num_scalar_prefetch=0,
            grid=grid,
            in_specs=[pl.BlockSpec((bt, tn, tD), lambda b, d, n: (b, n, d))],
            # Same output block across the reduction axis -> resident accumulator.
            out_specs=pl.BlockSpec((bt, 1, tD), lambda b, d, n: (b, 0, d)),
        ),
        compiler_params=pltpu.CompilerParams(
            dimension_semantics=("parallel", "parallel", "arbitrary"),
            # 8 MiB/buffer x 2 pipeline buffers exceeds v5e's 16 MiB default
            # scoped VMEM; 32 MiB fits every generation (v5e/v6e 128 MiB
            # physical, v7x 64 MiB physical / 32 MiB default scoped).
            vmem_limit_bytes=32 << 20,
        ),
        cost_estimate=pl.CostEstimate(
            flops=B * N * D,
            transcendentals=0,
            bytes_accessed=total_bytes + B * D * itemsize,
        ),
    )(seq)
    return out3[:, 0, :]


if __name__ == "__main__":
    # MinReadout has no parameters -- nothing to initialize.
    key = jax.random.PRNGKey(0)
    k1, k2, k3 = jax.random.split(key, 3)

    # 1) Small demo shape consistent with the module: (batch, nodes, hidden).
    #    small_fallback_bytes=0 forces the Pallas path (batch-fused kernel).
    B, N, D = 2, 16, 128
    seq = jax.random.normal(k1, (B, N, D), dtype=jnp.float32)
    out = jax.block_until_ready(min_readout(seq, small_fallback_bytes=0))
    assert out.shape == (B, D)
    assert jnp.allclose(out, jnp.min(seq, axis=1)), "fused-batch path mismatch"

    # 2) Multi-step + ragged-N (masked-tail) path via a tiny forced tile budget.
    seq2 = jax.random.normal(k2, (2, 100, 128), dtype=jnp.float32)
    out2 = jax.block_until_ready(
        min_readout(seq2, tile_bytes=4096, small_fallback_bytes=0)
    )  # tn=8, 13 reduction steps, masked tail
    assert jnp.allclose(out2, jnp.min(seq2, axis=1)), "tiled/ragged path mismatch"

    # 3) B == 1 exercises the lane-aligned D split (v7x dual-TensorCore path).
    seq3 = jax.random.normal(k3, (1, 64, 256), dtype=jnp.float32)
    out3 = jax.block_until_ready(min_readout(seq3, small_fallback_bytes=0))
    assert jnp.allclose(out3, jnp.min(seq3, axis=1)), "D-split path mismatch"

    # 4) Tiny-input XLA fallback (default threshold) still matches.
    out4 = jax.block_until_ready(min_readout(seq))
    assert jnp.allclose(out4, jnp.min(seq, axis=1)), "fallback mismatch"

    print("KERNEL_OK")
</pallas_src>

<mosaic_0001>
module attributes {stable_mosaic.version = 11 : i64} {
  func.func @kernel(%arg0: i32, %arg1: i32, %arg2: i32, %arg3: memref<2x16x128xf32, #tpu.memory_space<vmem>>, %arg4: memref<2x1x128xf32, #tpu.memory_space<vmem>>) attributes {dimension_semantics = [#tpu.dimension_semantics<parallel>, #tpu.dimension_semantics<parallel>, #tpu.dimension_semantics<arbitrary>], iteration_bounds = array<i64: 1, 1, 1>, scalar_prefetch = 0 : i64, scratch_operands = 0 : i64, tpu.core_type = #tpu.core_type<tc>, window_params = [{transform_indices = @transform_0, window_bounds = array<i64: 2, 16, 128>}, {transform_indices = @transform_1, window_bounds = array<i64: 2, 1, 128>}]} {
    %c0 = arith.constant 0 : index
    %c0_0 = arith.constant 0 : index
    %c0_1 = arith.constant 0 : index
    %0 = vector.load %arg3[%c0, %c0_0, %c0_1] : memref<2x16x128xf32, #tpu.memory_space<vmem>>, vector<2x16x128xf32>
    %cst = arith.constant dense<0x7F800000> : vector<2x128xf32>
    %1 = vector.multi_reduction <minimumf>, %0, %cst [1] : vector<2x16x128xf32> to vector<2x128xf32>
    %2 = vector.shape_cast %1 : vector<2x128xf32> to vector<2x1x128xf32>
    %c0_2 = arith.constant 0 : index
    %c0_3 = arith.constant 0 : index
    %c0_4 = arith.constant 0 : index
    %3 = vector.load %arg4[%c0_2, %c0_3, %c0_4] : memref<2x1x128xf32, #tpu.memory_space<vmem>>, vector<2x1x128xf32>
    tpu.vector_store %arg4[%c0_2, %c0_3, %c0_4], %2 {strides = array<i32>} : memref<2x1x128xf32, #tpu.memory_space<vmem>>, vector<2x1x128xf32>,
    return
  }
  func.func @transform_0(%arg0: i32, %arg1: i32, %arg2: i32) -> (i32, i32, i32) {
    %c0_i32 = arith.constant 0 : i32
    return %arg0, %arg2, %arg1 : i32, i32, i32
  }
  func.func @transform_1(%arg0: i32, %arg1: i32, %arg2: i32) -> (i32, i32, i32) {
    %c0_i32 = arith.constant 0 : i32
    %c0_i32_0 = arith.constant 0 : i32
    return %arg0, %c0_i32, %arg1 : i32, i32, i32
  }
}

</mosaic_0001>

<llo_original>
// kernel: tpu_custom_call.1
$region0: #{tpu_custom_call.1}
  #allocation0 [shape = 'u32[]', space=smem, size = 0x4, offset = 0x4, fixed_abs, tag = 'smem constant byte address 0x4 - core index']
  #allocation1 [shape = 'u32[144,128]{1,0:T(1,128)}', space=vmem, size = 0x12000, scoped, tag = 'internal scratch']
  %s0 = inlined_call_operand.hbm [shape: f32[2,16,128], index: 0, kind: input, shape index: {}]
  %s1 = inlined_call_operand.hbm [shape: f32[2,1,128], index: 1, kind: output, shape index: {}]
  %s2 = sld [smem:[#allocation0]]
  $region18: #{tpu_custom_call.1} parent=0
    _
  %s4 = ssub.s32 1, %s2
  %s5 = scalar_select 0, %s4, %s2
  $region1: #{tpu_custom_call.1} parent=0
    #allocation2 [shape = 'u8[16384]{0}', space=vmem, size = 0x4000, scoped, tag = 'input window, operand 0, single buffered']
    #allocation3 [shape = 's32[1]{0}', space=sflag, size = 0x4, scoped, tag = 'scoped memory for tpu_custom_call.1']
    #allocation4 [shape = 's32[1]{0}', space=sflag, size = 0x4, scoped, tag = 'scoped memory for tpu_custom_call.1']
    #allocation5 [shape = 'u8[1024]{0}', space=vmem, size = 0x400, scoped, tag = 'output window, operand 0, single buffered']
    %6 = vsyncpa [#allocation3], 0
    %7 = vsyncpa [#allocation4], 0
    // Predicated region
    $region2: #{tpu_custom_call.1} parent=1 // pred_check
      _
    $region3: #{tpu_custom_call.1} parent=1 // pred_check_branch
      %9 = sbr.rel (0) target = $region5
    $region4: #{tpu_custom_call.1} parent=1 // pred_region
      %s11 = ssub.s32 512, 512
      %12 = vsyncadd [#allocation3], %s11
      %s13 = sshll.u32 [#allocation2], 4
      %s14 = int_to_ptr.vmem [resolvable:$true] %s13
      %19 = dma.hbm_to_vmem [thread:$0]  %s0, 512, %s14, [#allocation3], 128, 128, 8
    $region5: #{tpu_custom_call.1} parent=1 // pred_fallthru
      _
    // Predicated region
    $region6: #{tpu_custom_call.1} parent=1 // pred_check
      _
    $region7: #{tpu_custom_call.1} parent=1 // pred_check_branch
      %21 = sbr.rel (0) target = $region9
    $region8: #{tpu_custom_call.1} parent=1 // pred_region
      %22 = dma.done [#allocation3], 512
    $region9: #{tpu_custom_call.1} parent=1 // pred_fallthru
      _
    %v23 = vld [vmem:[#allocation2] sm:$0xff]
    %v24 = vld [vmem:[#allocation2 + $0x8] sm:$0xff]
    %v25 = vld [vmem:[#allocation2 + $0x10] sm:$0xff]
    %v26 = vld [vmem:[#allocation2 + $0x18] sm:$0xff]
    %v27 = vmin.f32 %v23, %v24
    %v28 = vrot.slane %v27, 4
    %v29 = vmin.f32 %v27, %v28
    %v30 = vrot.slane %v29, 2
    %v31 = vmin.f32 %v29, %v30
    %v32 = vrot.slane %v31, 1
    %v33 = vmin.f32 %v31, %v32
    %v34 = vmin.f32 %v25, %v26
    %v35 = vrot.slane %v34, 4
    %v36 = vmin.f32 %v34, %v35
    %v37 = vrot.slane %v36, 2
    %v38 = vmin.f32 %v36, %v37
    %v39 = vrot.slane %v38, 1
    %v40 = vmin.f32 %v38, %v39
    %41 = vst [vmem:[#allocation5] sm:$0x1] %v33
    %42 = vst [vmem:[#allocation5 + $0x1] sm:$0x1] %v40
    // Predicated region
    $region10: #{tpu_custom_call.1} parent=1 // pred_check
      _
    $region11: #{tpu_custom_call.1} parent=1 // pred_check_branch
      %44 = sbr.rel (0) target = $region13
    $region12: #{tpu_custom_call.1} parent=1 // pred_region
      %s46 = ssub.s32 32, 32
      %47 = vsyncadd [#allocation4], %s46
      %s48 = sshll.u32 [#allocation5], 4
      %s49 = int_to_ptr.vmem [resolvable:$true] %s48
      %54 = dma.vmem_to_hbm [thread:$0]  %s49, 32, %s1, [#allocation4], 16, 16, 1
    $region13: #{tpu_custom_call.1} parent=1 // pred_fallthru
      _
    // Predicated region
    $region14: #{tpu_custom_call.1} parent=1 // pred_check
      _
    $region15: #{tpu_custom_call.1} parent=1 // pred_check_branch
      %56 = sbr.rel (0) target = $region17
    $region16: #{tpu_custom_call.1} parent=1 // pred_region
      %57 = dma.done [#allocation4], 32
    $region17: #{tpu_custom_call.1} parent=1 // pred_fallthru
      _
    %58 = vsyncpa [#allocation3], 1
    %59 = vsyncpa [#allocation4], 1

</llo_original>
